<compile_context>
chip_gen: v5e
topology: v5e:2x2
jax: 0.10.0
libtpu: 0.0.40
codegen_flags: <defaults>
</compile_context>

<pallas_src>
import jax
import jax.numpy as jnp
from jax.experimental import pallas as pl
from jax.experimental.pallas import tpu as pltpu


def _round_up(x, m):
    return (x + m - 1) // m * m


def _cdiv(a, b):
    return (a + b - 1) // b


# ---------------------------------------------------------------------------
# Kernel
# ---------------------------------------------------------------------------
def _make_mlp_kernel(tm, in_dim, k_pad, n_out):
    """Fused 4-layer MLP kernel for one (tm, in_dim) batch tile."""
    # Two independent row halves -> two independent dependency chains the LLO
    # scheduler can interleave (hides MXU drain / VPU epilogue on v5e/v6e).
    if tm % 16 == 0 and tm >= 32:
        half = tm // 2
        row_ranges = ((0, half), (half, tm))
    else:
        row_ranges = ((0, tm),)

    def kernel(x_ref,
               w1_ref, b1_ref,
               w2_ref, b2_ref,
               w3_ref, b3_ref,
               w4_ref, b4_ref,
               o_ref,
               xpad_ref):
        # Stage the f32 input tile into a lane-padded bf16 scratch once per
        # grid step: this replaces the old wrapper-side pad+cast HBM pass.
        if k_pad > in_dim:
            xpad_ref[:, in_dim:] = jnp.zeros((tm, k_pad - in_dim), jnp.bfloat16)
        xpad_ref[:, :in_dim] = x_ref[...].astype(jnp.bfloat16)

        for lo, hi in row_ranges:
            xh = xpad_ref[lo:hi, :]
            h = jnp.dot(xh, w1_ref[...], preferred_element_type=jnp.float32)
            h = jnp.maximum(h + b1_ref[...], 0.0).astype(jnp.bfloat16)
            h = jnp.dot(h, w2_ref[...], preferred_element_type=jnp.float32)
            h = jnp.maximum(h + b2_ref[...], 0.0).astype(jnp.bfloat16)
            h = jnp.dot(h, w3_ref[...], preferred_element_type=jnp.float32)
            h = jnp.maximum(h + b3_ref[...], 0.0).astype(jnp.bfloat16)
            out = jnp.dot(h, w4_ref[...], preferred_element_type=jnp.float32)
            out = out + b4_ref[...]
            # Store only the real output columns: unpadded (tm, n_out) f32.
            o_ref[lo:hi, :] = out[:, :n_out]

    return kernel


# ---------------------------------------------------------------------------
# One-time parameter preprocessing (hoisted out of the hot path)
# ---------------------------------------------------------------------------
def prepare_params(params, n_candles):
    """params: [(w, b)] in torch nn.Linear layout (w: (out, in), b: (out,)).

    Transposes to (in, out), zero-pads layer-1 K to a 128 multiple and layer-4
    N to 128 lanes, casts weights to bf16, biases to (1, out) f32.  Run once.
    """
    in_dim = 3 * n_candles * 5
    k_pad = _round_up(in_dim, 128)
    (w1, b1), (w2, b2), (w3, b3), (w4, b4) = params
    n_out = w4.shape[0]
    n_pad = _round_up(n_out, 128)

    w1p = jnp.pad(w1.T, ((0, k_pad - in_dim), (0, 0))).astype(jnp.bfloat16)
    w2p = w2.T.astype(jnp.bfloat16)
    w3p = w3.T.astype(jnp.bfloat16)
    w4p = jnp.pad(w4.T, ((0, 0), (0, n_pad - n_out))).astype(jnp.bfloat16)
    b1p = b1.reshape(1, -1).astype(jnp.float32)
    b2p = b2.reshape(1, -1).astype(jnp.float32)
    b3p = b3.reshape(1, -1).astype(jnp.float32)
    b4p = jnp.pad(b4.reshape(1, -1), ((0, 0), (0, n_pad - n_out))).astype(jnp.float32)

    return dict(w1=w1p, b1=b1p, w2=w2p, b2=b2p, w3=w3p, b3=b3p, w4=w4p, b4=b4p,
                in_dim=in_dim, k_pad=k_pad, n_out=n_out, n_pad=n_pad)


def _choose_tm(batch, tm_max):
    """Batch-tile size: >= 2 grid steps when possible (v7x megacore), rounded
    to 16 rows (bf16 sublane packing), bounded pad waste in the last tile."""
    if batch <= 16:
        return batch                      # single block equal to the array dim
    n_steps = max(2, _cdiv(batch, tm_max))
    return min(tm_max, max(16, _round_up(_cdiv(batch, n_steps), 16)))


# ---------------------------------------------------------------------------
# Forward wrapper
# ---------------------------------------------------------------------------
def simple_feed_forward_pallas(x, prepared, *, tm_max=1024):
    """x: (B, 3, N_CANDLES, 5) float32.  Returns (B, 3) float32."""
    in_dim, k_pad = prepared["in_dim"], prepared["k_pad"]
    n_out, n_pad = prepared["n_out"], prepared["n_pad"]
    h1 = prepared["w1"].shape[1]
    h2 = prepared["w2"].shape[1]
    h3 = prepared["w3"].shape[1]

    x2d = x.reshape(-1, in_dim).astype(jnp.float32)   # same as torch .view (free)
    batch = x2d.shape[0]
    tm = _choose_tm(batch, tm_max)
    grid = (pl.cdiv(batch, tm),)   # last block may be partial (masked writes)

    def const_spec(shape):
        # Same block every grid step -> fetched once, resident in VMEM.
        return pl.BlockSpec(shape, lambda i: (0, 0))

    flops = 2 * batch * (in_dim * h1 + h1 * h2 + h2 * h3 + h3 * n_out)
    param_bytes = 2 * (k_pad * h1 + h1 * h2 + h2 * h3 + h3 * n_pad) \
        + 4 * (h1 + h2 + h3 + n_pad)
    bytes_accessed = 4 * batch * (in_dim + n_out) + param_bytes

    kernel = _make_mlp_kernel(tm, in_dim, k_pad, n_out)

    out = pl.pallas_call(
        kernel,
        out_shape=jax.ShapeDtypeStruct((batch, n_out), jnp.float32),
        grid=grid,
        in_specs=[
            pl.BlockSpec((tm, in_dim), lambda i: (i, 0)),   # x tile (pipelined)
            const_spec((k_pad, h1)), const_spec((1, h1)),
            const_spec((h1, h2)),    const_spec((1, h2)),
            const_spec((h2, h3)),    const_spec((1, h3)),
            const_spec((h3, n_pad)), const_spec((1, n_pad)),
        ],
        out_specs=pl.BlockSpec((tm, n_out), lambda i: (i, 0)),
        scratch_shapes=[pltpu.VMEM((tm, k_pad), jnp.bfloat16)],
        compiler_params=pltpu.CompilerParams(
            dimension_semantics=("parallel",)),
        cost_estimate=pl.CostEstimate(flops=flops, transcendentals=0,
                                      bytes_accessed=bytes_accessed),
    )(x2d,
      prepared["w1"], prepared["b1"],
      prepared["w2"], prepared["b2"],
      prepared["w3"], prepared["b3"],
      prepared["w4"], prepared["b4"])
    return out


# ---------------------------------------------------------------------------
# Synthetic params + references + test
# ---------------------------------------------------------------------------
def init_params(key, n_candles):
    """Deterministic synthetic params in torch nn.Linear layout: w (out, in), b (out,)."""
    in_dim = 3 * n_candles * 5
    dims = [(in_dim, 256), (256, 256), (256, 128), (128, 3)]
    params = []
    for din, dout in dims:
        key, kw, kb = jax.random.split(key, 3)
        bound = 1.0 / (din ** 0.5)
        w = jax.random.uniform(kw, (dout, din), jnp.float32, -bound, bound)
        b = jax.random.uniform(kb, (dout,), jnp.float32, -bound, bound)
        params.append((w, b))
    return params


def reference_forward_f32(x, params, n_candles):
    h = x.reshape(-1, 3 * n_candles * 5)
    for i, (w, b) in enumerate(params):
        h = h @ w.T + b
        if i < len(params) - 1:
            h = jnp.maximum(h, 0.0)
    return h


def reference_forward_bf16(x, params, n_candles):
    # Same bf16-operand / f32-accumulate recipe as the kernel.
    h = x.reshape(-1, 3 * n_candles * 5)
    for i, (w, b) in enumerate(params):
        h = jnp.dot(h.astype(jnp.bfloat16), w.T.astype(jnp.bfloat16),
                    preferred_element_type=jnp.float32) + b
        if i < len(params) - 1:
            h = jnp.maximum(h, 0.0)
    return h


if __name__ == "__main__":
    N_CANDLES = 8

    key = jax.random.PRNGKey(0)
    kp, kx = jax.random.split(key)
    params = init_params(kp, N_CANDLES)
    prepared = prepare_params(params, N_CANDLES)   # hoisted: once, not per call

    # B=2 / B=10: tiny single-block path; B=100: 2 grid steps + partial tail tile.
    for B in (2, 10, 100):
        kx, sub = jax.random.split(kx)
        x = jax.random.normal(sub, (B, 3, N_CANDLES, 5), jnp.float32)

        out = simple_feed_forward_pallas(x, prepared)
        out = jax.block_until_ready(out)
        assert out.shape == (B, 3)

        ref_bf16 = reference_forward_bf16(x, params, N_CANDLES)
        ref_f32 = reference_forward_f32(x, params, N_CANDLES)
        # Tight check vs. a reference using the same bf16-operand recipe.
        assert jnp.allclose(out, ref_bf16, atol=2e-3, rtol=2e-3), f"bf16 ref mismatch at B={B}"
        # Loose sanity check vs. full f32 reference (bf16 quantization error only).
        assert jnp.allclose(out, ref_f32, atol=5e-2, rtol=5e-2), f"f32 ref mismatch at B={B}"

    print("KERNEL_OK")
</pallas_src>

<mosaic_0001>
module attributes {stable_mosaic.version = 11 : i64} {
  func.func @kernel(%arg0: i32, %arg1: memref<2x120xf32, #tpu.memory_space<vmem>>, %arg2: memref<128x256xbf16, #tpu.memory_space<vmem>>, %arg3: memref<1x256xf32, #tpu.memory_space<vmem>>, %arg4: memref<256x256xbf16, #tpu.memory_space<vmem>>, %arg5: memref<1x256xf32, #tpu.memory_space<vmem>>, %arg6: memref<256x128xbf16, #tpu.memory_space<vmem>>, %arg7: memref<1x128xf32, #tpu.memory_space<vmem>>, %arg8: memref<128x128xbf16, #tpu.memory_space<vmem>>, %arg9: memref<1x128xf32, #tpu.memory_space<vmem>>, %arg10: memref<2x3xf32, #tpu.memory_space<vmem>>, %arg11: memref<2x128xbf16, #tpu.memory_space<vmem>>) attributes {dimension_semantics = [#tpu.dimension_semantics<parallel>], iteration_bounds = array<i64: 1>, scalar_prefetch = 0 : i64, scratch_operands = 1 : i64, tpu.core_type = #tpu.core_type<tc>, window_params = [{transform_indices = @transform_0, window_bounds = array<i64: 2, 120>}, {pipeline_mode = #tpu.pipeline_mode<synchronous>, transform_indices = @transform_1, window_bounds = array<i64: 128, 256>}, {pipeline_mode = #tpu.pipeline_mode<synchronous>, transform_indices = @transform_2, window_bounds = array<i64: 1, 256>}, {pipeline_mode = #tpu.pipeline_mode<synchronous>, transform_indices = @transform_3, window_bounds = array<i64: 256, 256>}, {pipeline_mode = #tpu.pipeline_mode<synchronous>, transform_indices = @transform_4, window_bounds = array<i64: 1, 256>}, {pipeline_mode = #tpu.pipeline_mode<synchronous>, transform_indices = @transform_5, window_bounds = array<i64: 256, 128>}, {pipeline_mode = #tpu.pipeline_mode<synchronous>, transform_indices = @transform_6, window_bounds = array<i64: 1, 128>}, {pipeline_mode = #tpu.pipeline_mode<synchronous>, transform_indices = @transform_7, window_bounds = array<i64: 128, 128>}, {pipeline_mode = #tpu.pipeline_mode<synchronous>, transform_indices = @transform_8, window_bounds = array<i64: 1, 128>}, {transform_indices = @transform_9, window_bounds = array<i64: 2, 3>}]} {
    %cst = arith.constant 0.000000e+00 : bf16
    %0 = vector.broadcast %cst : bf16 to vector<2x8xbf16>
    %c0 = arith.constant 0 : index
    %c120 = arith.constant 120 : index
    %1 = vector.load %arg11[%c0, %c120] : memref<2x128xbf16, #tpu.memory_space<vmem>>, vector<2x8xbf16>
    tpu.vector_store %arg11[%c0, %c120], %0 {strides = array<i32>} : memref<2x128xbf16, #tpu.memory_space<vmem>>, vector<2x8xbf16>,
    %c0_0 = arith.constant 0 : index
    %c0_1 = arith.constant 0 : index
    %2 = vector.load %arg1[%c0_0, %c0_1] : memref<2x120xf32, #tpu.memory_space<vmem>>, vector<2x120xf32>
    %3 = arith.truncf %2 : vector<2x120xf32> to vector<2x120xbf16>
    %c0_2 = arith.constant 0 : index
    %c0_3 = arith.constant 0 : index
    %4 = vector.load %arg11[%c0_2, %c0_3] : memref<2x128xbf16, #tpu.memory_space<vmem>>, vector<2x120xbf16>
    tpu.vector_store %arg11[%c0_2, %c0_3], %3 {strides = array<i32>} : memref<2x128xbf16, #tpu.memory_space<vmem>>, vector<2x120xbf16>,
    %c0_4 = arith.constant 0 : index
    %c0_5 = arith.constant 0 : index
    %5 = vector.load %arg11[%c0_4, %c0_5] : memref<2x128xbf16, #tpu.memory_space<vmem>>, vector<2x128xbf16>
    %c0_6 = arith.constant 0 : index
    %c0_7 = arith.constant 0 : index
    %6 = vector.load %arg2[%c0_6, %c0_7] : memref<128x256xbf16, #tpu.memory_space<vmem>>, vector<128x256xbf16>
    %cst_8 = arith.constant dense<0.000000e+00> : vector<2x256xf32>
    %7 = tpu.matmul %5, %6, %cst_8 {dimension_numbers = #tpu.dot_dimension_numbers<[1], [0], [0], [1], [0, 0, 1, 1], [], []>} : vector<2x128xbf16>, vector<128x256xbf16>, vector<2x256xf32> -> vector<2x256xf32>
    %c0_9 = arith.constant 0 : index
    %c0_10 = arith.constant 0 : index
    %8 = vector.load %arg3[%c0_9, %c0_10] : memref<1x256xf32, #tpu.memory_space<vmem>>, vector<1x256xf32>
    %9 = vector.broadcast %8 : vector<1x256xf32> to vector<2x256xf32>
    %10 = arith.addf %7, %9 : vector<2x256xf32>
    %cst_11 = arith.constant 0.000000e+00 : f32
    %11 = vector.broadcast %cst_11 : f32 to vector<2x256xf32>
    %12 = arith.maximumf %10, %11 : vector<2x256xf32>
    %13 = arith.truncf %12 : vector<2x256xf32> to vector<2x256xbf16>
    %c0_12 = arith.constant 0 : index
    %c0_13 = arith.constant 0 : index
    %14 = vector.load %arg4[%c0_12, %c0_13] : memref<256x256xbf16, #tpu.memory_space<vmem>>, vector<256x256xbf16>
    %cst_14 = arith.constant dense<0.000000e+00> : vector<2x256xf32>
    %15 = tpu.matmul %13, %14, %cst_14 {dimension_numbers = #tpu.dot_dimension_numbers<[1], [0], [0], [1], [0, 0, 1, 1], [], []>} : vector<2x256xbf16>, vector<256x256xbf16>, vector<2x256xf32> -> vector<2x256xf32>
    %c0_15 = arith.constant 0 : index
    %c0_16 = arith.constant 0 : index
    %16 = vector.load %arg5[%c0_15, %c0_16] : memref<1x256xf32, #tpu.memory_space<vmem>>, vector<1x256xf32>
    %17 = vector.broadcast %16 : vector<1x256xf32> to vector<2x256xf32>
    %18 = arith.addf %15, %17 : vector<2x256xf32>
    %cst_17 = arith.constant 0.000000e+00 : f32
    %19 = vector.broadcast %cst_17 : f32 to vector<2x256xf32>
    %20 = arith.maximumf %18, %19 : vector<2x256xf32>
    %21 = arith.truncf %20 : vector<2x256xf32> to vector<2x256xbf16>
    %c0_18 = arith.constant 0 : index
    %c0_19 = arith.constant 0 : index
    %22 = vector.load %arg6[%c0_18, %c0_19] : memref<256x128xbf16, #tpu.memory_space<vmem>>, vector<256x128xbf16>
    %cst_20 = arith.constant dense<0.000000e+00> : vector<2x128xf32>
    %23 = tpu.matmul %21, %22, %cst_20 {dimension_numbers = #tpu.dot_dimension_numbers<[1], [0], [0], [1], [0, 0, 1, 1], [], []>} : vector<2x256xbf16>, vector<256x128xbf16>, vector<2x128xf32> -> vector<2x128xf32>
    %c0_21 = arith.constant 0 : index
    %c0_22 = arith.constant 0 : index
    %24 = vector.load %arg7[%c0_21, %c0_22] : memref<1x128xf32, #tpu.memory_space<vmem>>, vector<1x128xf32>
    %25 = vector.broadcast %24 : vector<1x128xf32> to vector<2x128xf32>
    %26 = arith.addf %23, %25 : vector<2x128xf32>
    %cst_23 = arith.constant 0.000000e+00 : f32
    %27 = vector.broadcast %cst_23 : f32 to vector<2x128xf32>
    %28 = arith.maximumf %26, %27 : vector<2x128xf32>
    %29 = arith.truncf %28 : vector<2x128xf32> to vector<2x128xbf16>
    %c0_24 = arith.constant 0 : index
    %c0_25 = arith.constant 0 : index
    %30 = vector.load %arg8[%c0_24, %c0_25] : memref<128x128xbf16, #tpu.memory_space<vmem>>, vector<128x128xbf16>
    %cst_26 = arith.constant dense<0.000000e+00> : vector<2x128xf32>
    %31 = tpu.matmul %29, %30, %cst_26 {dimension_numbers = #tpu.dot_dimension_numbers<[1], [0], [0], [1], [0, 0, 1, 1], [], []>} : vector<2x128xbf16>, vector<128x128xbf16>, vector<2x128xf32> -> vector<2x128xf32>
    %c0_27 = arith.constant 0 : index
    %c0_28 = arith.constant 0 : index
    %32 = vector.load %arg9[%c0_27, %c0_28] : memref<1x128xf32, #tpu.memory_space<vmem>>, vector<1x128xf32>
    %33 = vector.broadcast %32 : vector<1x128xf32> to vector<2x128xf32>
    %34 = arith.addf %31, %33 : vector<2x128xf32>
    %35 = vector.extract_strided_slice %34 {offsets = [0, 0], sizes = [2, 3], strides = [1, 1]} : vector<2x128xf32> to vector<2x3xf32>
    %c0_29 = arith.constant 0 : index
    %c0_30 = arith.constant 0 : index
    %36 = vector.load %arg10[%c0_29, %c0_30] : memref<2x3xf32, #tpu.memory_space<vmem>>, vector<2x3xf32>
    tpu.vector_store %arg10[%c0_29, %c0_30], %35 {strides = array<i32>} : memref<2x3xf32, #tpu.memory_space<vmem>>, vector<2x3xf32>,
    return
  }
  func.func @transform_0(%arg0: i32) -> (i32, i32) {
    %c0_i32 = arith.constant 0 : i32
    %c0_i32_0 = arith.constant 0 : i32
    return %arg0, %c0_i32 : i32, i32
  }
  func.func @transform_1(%arg0: i32) -> (i32, i32) {
    %c0_i32 = arith.constant 0 : i32
    %c0_i32_0 = arith.constant 0 : i32
    %c0_i32_1 = arith.constant 0 : i32
    return %c0_i32, %c0_i32_0 : i32, i32
  }
  func.func @transform_2(%arg0: i32) -> (i32, i32) {
    %c0_i32 = arith.constant 0 : i32
    %c0_i32_0 = arith.constant 0 : i32
    %c0_i32_1 = arith.constant 0 : i32
    return %c0_i32, %c0_i32_0 : i32, i32
  }
  func.func @transform_3(%arg0: i32) -> (i32, i32) {
    %c0_i32 = arith.constant 0 : i32
    %c0_i32_0 = arith.constant 0 : i32
    %c0_i32_1 = arith.constant 0 : i32
    return %c0_i32, %c0_i32_0 : i32, i32
  }
  func.func @transform_4(%arg0: i32) -> (i32, i32) {
    %c0_i32 = arith.constant 0 : i32
    %c0_i32_0 = arith.constant 0 : i32
    %c0_i32_1 = arith.constant 0 : i32
    return %c0_i32, %c0_i32_0 : i32, i32
  }
  func.func @transform_5(%arg0: i32) -> (i32, i32) {
    %c0_i32 = arith.constant 0 : i32
    %c0_i32_0 = arith.constant 0 : i32
    %c0_i32_1 = arith.constant 0 : i32
    return %c0_i32, %c0_i32_0 : i32, i32
  }
  func.func @transform_6(%arg0: i32) -> (i32, i32) {
    %c0_i32 = arith.constant 0 : i32
    %c0_i32_0 = arith.constant 0 : i32
    %c0_i32_1 = arith.constant 0 : i32
    return %c0_i32, %c0_i32_0 : i32, i32
  }
  func.func @transform_7(%arg0: i32) -> (i32, i32) {
    %c0_i32 = arith.constant 0 : i32
    %c0_i32_0 = arith.constant 0 : i32
    %c0_i32_1 = arith.constant 0 : i32
    return %c0_i32, %c0_i32_0 : i32, i32
  }
  func.func @transform_8(%arg0: i32) -> (i32, i32) {
    %c0_i32 = arith.constant 0 : i32
    %c0_i32_0 = arith.constant 0 : i32
    %c0_i32_1 = arith.constant 0 : i32
    return %c0_i32, %c0_i32_0 : i32, i32
  }
  func.func @transform_9(%arg0: i32) -> (i32, i32) {
    %c0_i32 = arith.constant 0 : i32
    %c0_i32_0 = arith.constant 0 : i32
    return %arg0, %c0_i32 : i32, i32
  }
}

</mosaic_0001>

<llo_original>
// kernel: tpu_custom_call.1
$region0: #{tpu_custom_call.1}
  #allocation0 [shape = 'u32[]', space=smem, size = 0x4, offset = 0x4, fixed_abs, tag = 'smem constant byte address 0x4 - core index']
  #allocation1 [shape = 'u32[72,128]{1,0:T(1,128)}', space=vmem, size = 0x9000, scoped, tag = 'internal scratch']
  #allocation2 [shape = 'bf16[2,128]{1,0:T(2,128)(2,1)}', space=vmem, size = 0x200, scoped, tag = 'scratch operand']
  %s0 = inlined_call_operand.hbm [shape: f32[2,120], index: 0, kind: input, shape index: {}]
  %s1 = inlined_call_operand.hbm [shape: bf16[128,256], index: 1, kind: input, shape index: {}]
  %s2 = inlined_call_operand.hbm [shape: f32[1,256], index: 2, kind: input, shape index: {}]
  %s3 = inlined_call_operand.hbm [shape: bf16[256,256], index: 3, kind: input, shape index: {}]
  %s4 = inlined_call_operand.vmem [shape: f32[1,256], index: 4, kind: input, shape index: {}]
  %s5 = inlined_call_operand.hbm [shape: bf16[256,128], index: 5, kind: input, shape index: {}]
  %s6 = inlined_call_operand.vmem [shape: f32[1,128], index: 6, kind: input, shape index: {}]
  %s7 = inlined_call_operand.hbm [shape: bf16[128,128], index: 7, kind: input, shape index: {}]
  %s8 = inlined_call_operand.vmem [shape: f32[1,128], index: 8, kind: input, shape index: {}]
  %s9 = inlined_call_operand.hbm [shape: f32[2,3], index: 9, kind: output, shape index: {}]
  %s10 = sld [smem:[#allocation0]]
  $region70: #{tpu_custom_call.1} parent=0
    _
  %s12 = ssub.s32 1, %s10
  %s13 = scalar_select 0, %s12, %s10
  $region1: #{tpu_custom_call.1} parent=0
    #allocation3 [shape = 'u8[1024]{0}', space=vmem, size = 0x400, scoped, tag = 'input window, operand 0, single buffered']
    #allocation4 [shape = 's32[1]{0}', space=sflag, size = 0x4, scoped, tag = 'scoped memory for tpu_custom_call.1']
    #allocation5 [shape = 's32[1]{0}', space=sflag, size = 0x4, scoped, tag = 'scoped memory for tpu_custom_call.1']
    #allocation6 [shape = 'u8[65536]{0}', space=vmem, size = 0x10000, scoped, tag = 'input window, operand 1, single buffered']
    #allocation7 [shape = 's32[1]{0}', space=sflag, size = 0x4, scoped, tag = 'scoped memory for tpu_custom_call.1']
    #allocation8 [shape = 'u8[1024]{0}', space=vmem, size = 0x400, scoped, tag = 'input window, operand 2, single buffered']
    #allocation9 [shape = 'u8[131072]{0}', space=vmem, size = 0x20000, scoped, tag = 'input window, operand 3, single buffered']
    #allocation10 [shape = 's32[1]{0}', space=sflag, size = 0x4, scoped, tag = 'scoped memory for tpu_custom_call.1']
    #allocation11 [shape = 'u8[65536]{0}', space=vmem, size = 0x10000, scoped, tag = 'input window, operand 5, single buffered']
    #allocation12 [shape = 'u8[32768]{0}', space=vmem, size = 0x8000, scoped, tag = 'input window, operand 7, single buffered']
    #allocation13 [shape = 's32[1]{0}', space=sflag, size = 0x4, scoped, tag = 'scoped memory for tpu_custom_call.1']
    #allocation14 [shape = 'u8[1024]{0}', space=vmem, size = 0x400, scoped, tag = 'output window, operand 0, single buffered']
    %14 = vsyncpa [#allocation4], 0
    %15 = vsyncpa [#allocation7], 0
    %16 = vsyncpa [#allocation10], 0
    %17 = vsyncpa [#allocation13], 0
    %18 = vsyncpa [#allocation5], 0
    // Predicated region
    $region2: #{tpu_custom_call.1} parent=1 // pred_check
      _
    $region3: #{tpu_custom_call.1} parent=1 // pred_check_branch
      %20 = sbr.rel (0) target = $region5
    $region4: #{tpu_custom_call.1} parent=1 // pred_region
      %22 = vsyncadd [#allocation4], 0
      %s24 = sshll.u32 %s0, 4
      %s25 = int_to_ptr.hbm [resolvable:$true] %s24
      %s26 = sshll.u32 [#allocation3], 4
      %s27 = int_to_ptr.vmem [resolvable:$true] %s26
      %29 = dma.hbm_to_vmem [thread:$0]  %s25, 32, %s27, [#allocation4]
    $region5: #{tpu_custom_call.1} parent=1 // pred_fallthru
      _
    // Predicated region
    $region6: #{tpu_custom_call.1} parent=1 // pred_check
      _
    $region7: #{tpu_custom_call.1} parent=1 // pred_check_branch
      %31 = sbr.rel (0) target = $region9
    $region8: #{tpu_custom_call.1} parent=1 // pred_region
      %33 = vsyncadd [#allocation7], 0
      %s34 = sshll.u32 %s1, 4
      %s35 = int_to_ptr.hbm [resolvable:$true] %s34
      %s36 = sshll.u32 [#allocation6], 4
      %s37 = int_to_ptr.vmem [resolvable:$true] %s36
      %42 = dma.hbm_to_vmem [thread:$0]  %s35, 2048, %s37, [#allocation7], 128, 128, 8
    $region9: #{tpu_custom_call.1} parent=1 // pred_fallthru
      _
    // Predicated region
    $region10: #{tpu_custom_call.1} parent=1 // pred_check
      _
    $region11: #{tpu_custom_call.1} parent=1 // pred_check_branch
      %44 = sbr.rel (0) target = $region13
    $region12: #{tpu_custom_call.1} parent=1 // pred_region
      %46 = vsyncadd [#allocation7], 0
      %s48 = sshll.u32 %s2, 4
      %s49 = int_to_ptr.hbm [resolvable:$true] %s48
      %s50 = sshll.u32 [#allocation8], 4
      %s51 = int_to_ptr.vmem [resolvable:$true] %s50
      %53 = dma.hbm_to_vmem [thread:$0]  %s49, 32, %s51, [#allocation7]
    $region13: #{tpu_custom_call.1} parent=1 // pred_fallthru
      _
    // Predicated region
    $region14: #{tpu_custom_call.1} parent=1 // pred_check
      _
    $region15: #{tpu_custom_call.1} parent=1 // pred_check_branch
      %55 = sbr.rel (0) target = $region17
    $region16: #{tpu_custom_call.1} parent=1 // pred_region
      %57 = vsyncadd [#allocation10], 0
      %s58 = sshll.u32 %s3, 4
      %s59 = int_to_ptr.hbm [resolvable:$true] %s58
      %s60 = sshll.u32 [#allocation9], 4
      %s61 = int_to_ptr.vmem [resolvable:$true] %s60
      %66 = dma.hbm_to_vmem [thread:$0]  %s59, 4096, %s61, [#allocation10], 128, 128, 8
    $region17: #{tpu_custom_call.1} parent=1 // pred_fallthru
      _
    // Predicated region
    $region18: #{tpu_custom_call.1} parent=1 // pred_check
      _
    $region19: #{tpu_custom_call.1} parent=1 // pred_check_branch
      %68 = sbr.rel (0) target = $region21
    $region20: #{tpu_custom_call.1} parent=1 // pred_region
      _
    $region21: #{tpu_custom_call.1} parent=1 // pred_fallthru
      _
    // Predicated region
    $region22: #{tpu_custom_call.1} parent=1 // pred_check
      _
    $region23: #{tpu_custom_call.1} parent=1 // pred_check_branch
      %70 = sbr.rel (0) target = $region25
    $region24: #{tpu_custom_call.1} parent=1 // pred_region
      %72 = vsyncadd [#allocation10], 0
      %s73 = sshll.u32 %s5, 4
      %s74 = int_to_ptr.hbm [resolvable:$true] %s73
      %s75 = sshll.u32 [#allocation11], 4
      %s76 = int_to_ptr.vmem [resolvable:$true] %s75
      %81 = dma.hbm_to_vmem [thread:$0]  %s74, 2048, %s76, [#allocation10], 64, 64, 4
    $region25: #{tpu_custom_call.1} parent=1 // pred_fallthru
      _
    // Predicated region
    $region26: #{tpu_custom_call.1} parent=1 // pred_check
      _
    $region27: #{tpu_custom_call.1} parent=1 // pred_check_branch
      %83 = sbr.rel (0) target = $region29
    $region28: #{tpu_custom_call.1} parent=1 // pred_region
      _
    $region29: #{tpu_custom_call.1} parent=1 // pred_fallthru
      _
    // Predicated region
    $region30: #{tpu_custom_call.1} parent=1 // pred_check
      _
    $region31: #{tpu_custom_call.1} parent=1 // pred_check_branch
      %85 = sbr.rel (0) target = $region33
    $region32: #{tpu_custom_call.1} parent=1 // pred_region
      %87 = vsyncadd [#allocation13], 0
      %s88 = sshll.u32 %s7, 4
      %s89 = int_to_ptr.hbm [resolvable:$true] %s88
      %s90 = sshll.u32 [#allocation12], 4
      %s91 = int_to_ptr.vmem [resolvable:$true] %s90
      %96 = dma.hbm_to_vmem [thread:$0]  %s89, 1024, %s91, [#allocation13], 64, 64, 4
    $region33: #{tpu_custom_call.1} parent=1 // pred_fallthru
      _
    // Predicated region
    $region34: #{tpu_custom_call.1} parent=1 // pred_check
      _
    $region35: #{tpu_custom_call.1} parent=1 // pred_check_branch
      %98 = sbr.rel (0) target = $region37
    $region36: #{tpu_custom_call.1} parent=1 // pred_region
      _
    $region37: #{tpu_custom_call.1} parent=1 // pred_fallthru
      _
    // Predicated region
    $region38: #{tpu_custom_call.1} parent=1 // pred_check
      _
    $region39: #{tpu_custom_call.1} parent=1 // pred_check_branch
      %100 = sbr.rel (0) target = $region41
    $region40: #{tpu_custom_call.1} parent=1 // pred_region
      %102 = dma.done [#allocation4], 32
    $region41: #{tpu_custom_call.1} parent=1 // pred_fallthru
      _
    // Predicated region
    $region42: #{tpu_custom_call.1} parent=1 // pred_check
      _
    $region43: #{tpu_custom_call.1} parent=1 // pred_check_branch
      %104 = sbr.rel (0) target = $region45
    $region44: #{tpu_custom_call.1} parent=1 // pred_region
      %106 = dma.done [#allocation7], 2048
    $region45: #{tpu_custom_call.1} parent=1 // pred_fallthru
      _
    // Predicated region
    $region46: #{tpu_custom_call.1} parent=1 // pred_check
      _
    $region47: #{tpu_custom_call.1} parent=1 // pred_check_branch
      %108 = sbr.rel (0) target = $region49
    $region48: #{tpu_custom_call.1} parent=1 // pred_region
      %110 = dma.done [#allocation7], 32
    $region49: #{tpu_custom_call.1} parent=1 // pred_fallthru
      _
    // Predicated region
    $region50: #{tpu_custom_call.1} parent=1 // pred_check
      _
    $region51: #{tpu_custom_call.1} parent=1 // pred_check_branch
      %112 = sbr.rel (0) target = $region53
    $region52: #{tpu_custom_call.1} parent=1 // pred_region
      %114 = dma.done [#allocation10], 4096
    $region53: #{tpu_custom_call.1} parent=1 // pred_fallthru
      _
    // Predicated region
    $region54: #{tpu_custom_call.1} parent=1 // pred_check
      _
    $region55: #{tpu_custom_call.1} parent=1 // pred_check_branch
      %116 = sbr.rel (0) target = $region57
    $region56: #{tpu_custom_call.1} parent=1 // pred_region
      %118 = dma.done [#allocation10], 2048
    $region57: #{tpu_custom_call.1} parent=1 // pred_fallthru
      _
    // Predicated region
    $region58: #{tpu_custom_call.1} parent=1 // pred_check
      _
    $region59: #{tpu_custom_call.1} parent=1 // pred_check_branch
      %120 = sbr.rel (0) target = $region61
    $region60: #{tpu_custom_call.1} parent=1 // pred_region
      %122 = dma.done [#allocation13], 1024
    $region61: #{tpu_custom_call.1} parent=1 // pred_fallthru
      _
    %vm124 = vcmask 1041344
    %125 = vst.msk [vmem:[#allocation2] sm:$0x1] %vm124, 0
    %v126 = vld [vmem:[#allocation3] sm:$0x3]
    %v127 = vpack.c.bf16 %v126, %v126
    %vm128 = vcmask 974848
    %129 = vst.msk [vmem:[#allocation2] sm:$0x1] %vm128, %v127
    %v130 = vld [vmem:[#allocation2] sm:$0x1]
    %v131 = vld [vmem:[#allocation6] sm:$0xff]
    %v132 = vld [vmem:[#allocation6 + $0x8] sm:$0xff]
    %v133 = vld [vmem:[#allocation6 + $0x10] sm:$0xff]
    %v134 = vld [vmem:[#allocation6 + $0x18] sm:$0xff]
    %v135 = vld [vmem:[#allocation6 + $0x20] sm:$0xff]
    %v136 = vld [vmem:[#allocation6 + $0x28] sm:$0xff]
    %v137 = vld [vmem:[#allocation6 + $0x30] sm:$0xff]
    %v138 = vld [vmem:[#allocation6 + $0x38] sm:$0xff]
    %v139 = vld [vmem:[#allocation6 + $0x40] sm:$0xff]
    %v140 = vld [vmem:[#allocation6 + $0x48] sm:$0xff]
    %v141 = vld [vmem:[#allocation6 + $0x50] sm:$0xff]
    %v142 = vld [vmem:[#allocation6 + $0x58] sm:$0xff]
    %v143 = vld [vmem:[#allocation6 + $0x60] sm:$0xff]
    %v144 = vld [vmem:[#allocation6 + $0x68] sm:$0xff]
    %v145 = vld [vmem:[#allocation6 + $0x70] sm:$0xff]
    %v146 = vld [vmem:[#allocation6 + $0x78] sm:$0xff]
    %v147 = vld [vmem:[#allocation8] sm:$0x3]
    %v149 = vperm.slane %v147, 0
    %v150 = vperm.slane %v147, 1
    %v169 = vunpack.c.l.b16 %v131
    %v170 = vunpack.c.h.b16 %v131
    %v171 = vunpack.c.l.b16 %v132
    %v172 = vunpack.c.h.b16 %v132
    %v173 = vunpack.c.l.b16 %v133
    %v174 = vunpack.c.h.b16 %v133
    %v175 = vunpack.c.l.b16 %v134
    %v176 = vunpack.c.h.b16 %v134
    %v177 = vunpack.c.l.b16 %v135
    %v178 = vunpack.c.h.b16 %v135
    %v179 = vunpack.c.l.b16 %v136
    %v180 = vunpack.c.h.b16 %v136
    %v181 = vunpack.c.l.b16 %v137
    %v182 = vunpack.c.h.b16 %v137
    %v183 = vunpack.c.l.b16 %v138
    %v184 = vunpack.c.h.b16 %v138
    %v185 = vunpack.c.l.b16 %v139
    %v186 = vunpack.c.h.b16 %v139
    %v187 = vunpack.c.l.b16 %v140
    %v188 = vunpack.c.h.b16 %v140
    %v189 = vunpack.c.l.b16 %v141
    %v190 = vunpack.c.h.b16 %v141
    %v191 = vunpack.c.l.b16 %v142
    %v192 = vunpack.c.h.b16 %v142
    %v193 = vunpack.c.l.b16 %v143
    %v194 = vunpack.c.h.b16 %v143
    %v195 = vunpack.c.l.b16 %v144
    %v196 = vunpack.c.h.b16 %v144
    %v197 = vunpack.c.l.b16 %v145
    %v198 = vunpack.c.h.b16 %v145
    %v199 = vunpack.c.l.b16 %v146
    %v200 = vunpack.c.h.b16 %v146
    %v201 = vpack.c.b16 %v171, %v169
    %v202 = vpack.c.b16 %v172, %v170
    %v203 = vpack.c.b16 %v175, %v173
    %v204 = vpack.c.b16 %v176, %v174
    %v205 = vpack.c.b16 %v179, %v177
    %v206 = vpack.c.b16 %v180, %v178
    %v207 = vpack.c.b16 %v183, %v181
    %v208 = vpack.c.b16 %v184, %v182
    %v209 = vpack.c.b16 %v187, %v185
    %v210 = vpack.c.b16 %v188, %v186
    %v211 = vpack.c.b16 %v191, %v189
    %v212 = vpack.c.b16 %v192, %v190
    %v213 = vpack.c.b16 %v195, %v193
    %v214 = vpack.c.b16 %v196, %v194
    %v215 = vpack.c.b16 %v199, %v197
    %v216 = vpack.c.b16 %v200, %v198
    %233 = vmatpush.bf16.msra.mxu0 %v215
    %234 = vmatpush.bf16.msra.mxu0 %v213
    %235 = vmatpush.bf16.msra.mxu0 %v211
    %236 = vmatpush.bf16.msra.mxu0 %v209
    %237 = vmatpush.bf16.msra.mxu0 %v207
    %238 = vmatpush.bf16.msra.mxu0 %v205
    %239 = vmatpush.bf16.msra.mxu0 %v203
    %240 = vmatpush.bf16.msra.mxu0 %v201
    %241 = vmatmul.bf16.gmra.mxu0 %v130
    %v242 = vpop.f32.mrf.mxu0
    %v243 = vadd.f32 %v149, %v242
    %v244 = vpop.f32.mrf.mxu0
    %245 = vdwg.mxu0
    %246 = vmatpush.bf16.msra.mxu0 %v216
    %247 = vmatpush.bf16.msra.mxu0 %v214
    %248 = vmatpush.bf16.msra.mxu0 %v212
    %249 = vmatpush.bf16.msra.mxu0 %v210
    %250 = vmatpush.bf16.msra.mxu0 %v208
    %251 = vmatpush.bf16.msra.mxu0 %v206
    %252 = vmatpush.bf16.msra.mxu0 %v204
    %253 = vmatpush.bf16.msra.mxu0 %v202
    %254 = vmatmul.bf16.gmra.mxu0 %v130
    %v255 = vpop.f32.mrf.mxu0
    %v256 = vadd.f32 %v150, %v255
    %v257 = vpop.f32.mrf.mxu0
    %258 = vdwg.mxu0
    %v259 = vmax.f32 %v243, 0.0
    %v260 = vmax.f32 %v256, 0.0
    %v261 = vpack.c.bf16 %v259, %v259
    %v262 = vpack.c.bf16 %v260, %v260
    %v263 = vld [vmem:[#allocation9] sm:$0xff]
    %v264 = vld [vmem:[#allocation9 + $0x8] sm:$0xff]
    %v265 = vld [vmem:[#allocation9 + $0x10] sm:$0xff]
    %v266 = vld [vmem:[#allocation9 + $0x18] sm:$0xff]
    %v267 = vld [vmem:[#allocation9 + $0x20] sm:$0xff]
    %v268 = vld [vmem:[#allocation9 + $0x28] sm:$0xff]
    %v269 = vld [vmem:[#allocation9 + $0x30] sm:$0xff]
    %v270 = vld [vmem:[#allocation9 + $0x38] sm:$0xff]
    %v271 = vld [vmem:[#allocation9 + $0x40] sm:$0xff]
    %v272 = vld [vmem:[#allocation9 + $0x48] sm:$0xff]
    %v273 = vld [vmem:[#allocation9 + $0x50] sm:$0xff]
    %v274 = vld [vmem:[#allocation9 + $0x58] sm:$0xff]
    %v275 = vld [vmem:[#allocation9 + $0x60] sm:$0xff]
    %v276 = vld [vmem:[#allocation9 + $0x68] sm:$0xff]
    %v277 = vld [vmem:[#allocation9 + $0x70] sm:$0xff]
    %v278 = vld [vmem:[#allocation9 + $0x78] sm:$0xff]
    %v279 = vld [vmem:[#allocation9 + $0x80] sm:$0xff]
    %v280 = vld [vmem:[#allocation9 + $0x88] sm:$0xff]
    %v281 = vld [vmem:[#allocation9 + $0x90] sm:$0xff]
    %v282 = vld [vmem:[#allocation9 + $0x98] sm:$0xff]
    %v283 = vld [vmem:[#allocation9 + $0xa0] sm:$0xff]
    %v284 = vld [vmem:[#allocation9 + $0xa8] sm:$0xff]
    %v285 = vld [vmem:[#allocation9 + $0xb0] sm:$0xff]
    %v286 = vld [vmem:[#allocation9 + $0xb8] sm:$0xff]
    %v287 = vld [vmem:[#allocation9 + $0xc0] sm:$0xff]
    %v288 = vld [vmem:[#allocation9 + $0xc8] sm:$0xff]
    %v289 = vld [vmem:[#allocation9 + $0xd0] sm:$0xff]
    %v290 = vld [vmem:[#allocation9 + $0xd8] sm:$0xff]
    %v291 = vld [vmem:[#allocation9 + $0xe0] sm:$0xff]
    %v292 = vld [vmem:[#allocation9 + $0xe8] sm:$0xff]
    %v293 = vld [vmem:[#allocation9 + $0xf0] sm:$0xff]
    %v294 = vld [vmem:[#allocation9 + $0xf8] sm:$0xff]
    %v295 = vld [vmem:[%s4] sm:$0x3]
    %v297 = vperm.slane %v295, 0
    %v298 = vperm.slane %v295, 1
    %v333 = vunpack.c.l.b16 %v263
    %v334 = vunpack.c.h.b16 %v263
    %v335 = vunpack.c.l.b16 %v264
    %v336 = vunpack.c.h.b16 %v264
    %v337 = vunpack.c.l.b16 %v265
    %v338 = vunpack.c.h.b16 %v265
    %v339 = vunpack.c.l.b16 %v266
    %v340 = vunpack.c.h.b16 %v266
    %v341 = vunpack.c.l.b16 %v267
    %v342 = vunpack.c.h.b16 %v267
    %v343 = vunpack.c.l.b16 %v268
    %v344 = vunpack.c.h.b16 %v268
    %v345 = vunpack.c.l.b16 %v269
    %v346 = vunpack.c.h.b16 %v269
    %v347 = vunpack.c.l.b16 %v270
    %v348 = vunpack.c.h.b16 %v270
    %v349 = vunpack.c.l.b16 %v271
    %v350 = vunpack.c.h.b16 %v271
    %v351 = vunpack.c.l.b16 %v272
    %v352 = vunpack.c.h.b16 %v272
    %v353 = vunpack.c.l.b16 %v273
    %v354 = vunpack.c.h.b16 %v273
    %v355 = vunpack.c.l.b16 %v274
    %v356 = vunpack.c.h.b16 %v274
    %v357 = vunpack.c.l.b16 %v275
    %v358 = vunpack.c.h.b16 %v275
    %v359 = vunpack.c.l.b16 %v276
    %v360 = vunpack.c.h.b16 %v276
    %v361 = vunpack.c.l.b16 %v277
    %v362 = vunpack.c.h.b16 %v277
    %v363 = vunpack.c.l.b16 %v278
    %v364 = vunpack.c.h.b16 %v278
    %v365 = vunpack.c.l.b16 %v279
    %v366 = vunpack.c.h.b16 %v279
    %v367 = vunpack.c.l.b16 %v280
    %v368 = vunpack.c.h.b16 %v280
    %v369 = vunpack.c.l.b16 %v281
    %v370 = vunpack.c.h.b16 %v281
    %v371 = vunpack.c.l.b16 %v282
    %v372 = vunpack.c.h.b16 %v282
    %v373 = vunpack.c.l.b16 %v283
    %v374 = vunpack.c.h.b16 %v283
    %v375 = vunpack.c.l.b16 %v284
    %v376 = vunpack.c.h.b16 %v284
    %v377 = vunpack.c.l.b16 %v285
    %v378 = vunpack.c.h.b16 %v285
    %v379 = vunpack.c.l.b16 %v286
    %v380 = vunpack.c.h.b16 %v286
    %v381 = vunpack.c.l.b16 %v287
    %v382 = vunpack.c.h.b16 %v287
    %v383 = vunpack.c.l.b16 %v288
    %v384 = vunpack.c.h.b16 %v288
    %v385 = vunpack.c.l.b16 %v289
    %v386 = vunpack.c.h.b16 %v289
    %v387 = vunpack.c.l.b16 %v290
    %v388 = vunpack.c.h.b16 %v290
    %v389 = vunpack.c.l.b16 %v291
    %v390 = vunpack.c.h.b16 %v291
    %v391 = vunpack.c.l.b16 %v292
    %v392 = vunpack.c.h.b16 %v292
    %v393 = vunpack.c.l.b16 %v293
    %v394 = vunpack.c.h.b16 %v293
    %v395 = vunpack.c.l.b16 %v294
    %v396 = vunpack.c.h.b16 %v294
    %v397 = vpack.c.b16 %v335, %v333
    %v398 = vpack.c.b16 %v336, %v334
    %v399 = vpack.c.b16 %v339, %v337
    %v400 = vpack.c.b16 %v340, %v338
    %v401 = vpack.c.b16 %v343, %v341
    %v402 = vpack.c.b16 %v344, %v342
    %v403 = vpack.c.b16 %v347, %v345
    %v404 = vpack.c.b16 %v348, %v346
    %v405 = vpack.c.b16 %v351, %v349
    %v406 = vpack.c.b16 %v352, %v350
    %v407 = vpack.c.b16 %v355, %v353
    %v408 = vpack.c.b16 %v356, %v354
    %v409 = vpack.c.b16 %v359, %v357
    %v410 = vpack.c.b16 %v360, %v358
    %v411 = vpack.c.b16 %v363, %v361
    %v412 = vpack.c.b16 %v364, %v362
    %v413 = vpack.c.b16 %v367, %v365
    %v414 = vpack.c.b16 %v368, %v366
    %v415 = vpack.c.b16 %v371, %v369
    %v416 = vpack.c.b16 %v372, %v370
    %v417 = vpack.c.b16 %v375, %v373
    %v418 = vpack.c.b16 %v376, %v374
    %v419 = vpack.c.b16 %v379, %v377
    %v420 = vpack.c.b16 %v380, %v378
    %v421 = vpack.c.b16 %v383, %v381
    %v422 = vpack.c.b16 %v384, %v382
    %v423 = vpack.c.b16 %v387, %v385
    %v424 = vpack.c.b16 %v388, %v386
    %v425 = vpack.c.b16 %v391, %v389
    %v426 = vpack.c.b16 %v392, %v390
    %v427 = vpack.c.b16 %v395, %v393
    %v428 = vpack.c.b16 %v396, %v394
    %461 = vmatpush.bf16.msra.mxu0 %v411
    %462 = vmatpush.bf16.msra.mxu0 %v409
    %463 = vmatpush.bf16.msra.mxu0 %v407
    %464 = vmatpush.bf16.msra.mxu0 %v405
    %465 = vmatpush.bf16.msra.mxu0 %v403
    %466 = vmatpush.bf16.msra.mxu0 %v401
    %467 = vmatpush.bf16.msra.mxu0 %v399
    %468 = vmatpush.bf16.msra.mxu0 %v397
    %469 = vmatmul.bf16.gmra.mxu0 %v261
    %v470 = vpop.f32.mrf.mxu0
    %v471 = vadd.f32 %v297, %v470
    %v472 = vpop.f32.mrf.mxu0
    %473 = vdwg.mxu0
    %474 = vmatpush.bf16.msra.mxu0 %v427
    %475 = vmatpush.bf16.msra.mxu0 %v425
    %476 = vmatpush.bf16.msra.mxu0 %v423
    %477 = vmatpush.bf16.msra.mxu0 %v421
    %478 = vmatpush.bf16.msra.mxu0 %v419
    %479 = vmatpush.bf16.msra.mxu0 %v417
    %480 = vmatpush.bf16.msra.mxu0 %v415
    %481 = vmatpush.bf16.msra.mxu0 %v413
    %482 = vmatmul.bf16.gmra.mxu0 %v262
    %v483 = vpop.f32.mrf.mxu0
    %v484 = vadd.f32 %v471, %v483
    %v485 = vpop.f32.mrf.mxu0
    %486 = vdwg.mxu0
    %487 = vmatpush.bf16.msra.mxu0 %v412
    %488 = vmatpush.bf16.msra.mxu0 %v410
    %489 = vmatpush.bf16.msra.mxu0 %v408
    %490 = vmatpush.bf16.msra.mxu0 %v406
    %491 = vmatpush.bf16.msra.mxu0 %v404
    %492 = vmatpush.bf16.msra.mxu0 %v402
    %493 = vmatpush.bf16.msra.mxu0 %v400
    %494 = vmatpush.bf16.msra.mxu0 %v398
    %495 = vmatmul.bf16.gmra.mxu0 %v261
    %v496 = vpop.f32.mrf.mxu0
    %v497 = vadd.f32 %v298, %v496
    %v498 = vpop.f32.mrf.mxu0
    %499 = vdwg.mxu0
    %500 = vmatpush.bf16.msra.mxu0 %v428
    %501 = vmatpush.bf16.msra.mxu0 %v426
    %502 = vmatpush.bf16.msra.mxu0 %v424
    %503 = vmatpush.bf16.msra.mxu0 %v422
    %504 = vmatpush.bf16.msra.mxu0 %v420
    %505 = vmatpush.bf16.msra.mxu0 %v418
    %506 = vmatpush.bf16.msra.mxu0 %v416
    %507 = vmatpush.bf16.msra.mxu0 %v414
    %508 = vmatmul.bf16.gmra.mxu0 %v262
    %v509 = vpop.f32.mrf.mxu0
    %v510 = vadd.f32 %v497, %v509
    %v511 = vpop.f32.mrf.mxu0
    %512 = vdwg.mxu0
    %v513 = vmax.f32 %v484, 0.0
    %v514 = vmax.f32 %v510, 0.0
    %v515 = vpack.c.bf16 %v513, %v513
    %v516 = vpack.c.bf16 %v514, %v514
    %v517 = vld [vmem:[#allocation11] sm:$0xf]
    %v518 = vld [vmem:[#allocation11 + $0x4] sm:$0xf]
    %v519 = vld [vmem:[#allocation11 + $0x8] sm:$0xf]
    %v520 = vld [vmem:[#allocation11 + $0xc] sm:$0xf]
    %v521 = vld [vmem:[#allocation11 + $0x10] sm:$0xf]
    %v522 = vld [vmem:[#allocation11 + $0x14] sm:$0xf]
    %v523 = vld [vmem:[#allocation11 + $0x18] sm:$0xf]
    %v524 = vld [vmem:[#allocation11 + $0x1c] sm:$0xf]
    %v525 = vld [vmem:[#allocation11 + $0x20] sm:$0xf]
    %v526 = vld [vmem:[#allocation11 + $0x24] sm:$0xf]
    %v527 = vld [vmem:[#allocation11 + $0x28] sm:$0xf]
    %v528 = vld [vmem:[#allocation11 + $0x2c] sm:$0xf]
    %v529 = vld [vmem:[#allocation11 + $0x30] sm:$0xf]
    %v530 = vld [vmem:[#allocation11 + $0x34] sm:$0xf]
    %v531 = vld [vmem:[#allocation11 + $0x38] sm:$0xf]
    %v532 = vld [vmem:[#allocation11 + $0x3c] sm:$0xf]
    %v533 = vld [vmem:[#allocation11 + $0x40] sm:$0xf]
    %v534 = vld [vmem:[#allocation11 + $0x44] sm:$0xf]
    %v535 = vld [vmem:[#allocation11 + $0x48] sm:$0xf]
    %v536 = vld [vmem:[#allocation11 + $0x4c] sm:$0xf]
    %v537 = vld [vmem:[#allocation11 + $0x50] sm:$0xf]
    %v538 = vld [vmem:[#allocation11 + $0x54] sm:$0xf]
    %v539 = vld [vmem:[#allocation11 + $0x58] sm:$0xf]
    %v540 = vld [vmem:[#allocation11 + $0x5c] sm:$0xf]
    %v541 = vld [vmem:[#allocation11 + $0x60] sm:$0xf]
    %v542 = vld [vmem:[#allocation11 + $0x64] sm:$0xf]
    %v543 = vld [vmem:[#allocation11 + $0x68] sm:$0xf]
    %v544 = vld [vmem:[#allocation11 + $0x6c] sm:$0xf]
    %v545 = vld [vmem:[#allocation11 + $0x70] sm:$0xf]
    %v546 = vld [vmem:[#allocation11 + $0x74] sm:$0xf]
    %v547 = vld [vmem:[#allocation11 + $0x78] sm:$0xf]
    %v548 = vld [vmem:[#allocation11 + $0x7c] sm:$0xf]
    %v549 = vld [vmem:[%s6] sm:$0x1]
    %v551 = vperm.slane %v549, 0
    %v585 = vunpack.c.l.b16 %v517
    %v586 = vunpack.c.l.b16 %v518
    %v587 = vunpack.c.l.b16 %v519
    %v588 = vunpack.c.l.b16 %v520
    %v589 = vunpack.c.l.b16 %v521
    %v590 = vunpack.c.l.b16 %v522
    %v591 = vunpack.c.l.b16 %v523
    %v592 = vunpack.c.l.b16 %v524
    %v593 = vunpack.c.l.b16 %v525
    %v594 = vunpack.c.l.b16 %v526
    %v595 = vunpack.c.l.b16 %v527
    %v596 = vunpack.c.l.b16 %v528
    %v597 = vunpack.c.l.b16 %v529
    %v598 = vunpack.c.l.b16 %v530
    %v599 = vunpack.c.l.b16 %v531
    %v600 = vunpack.c.l.b16 %v532
    %v601 = vunpack.c.l.b16 %v533
    %v602 = vunpack.c.l.b16 %v534
    %v603 = vunpack.c.l.b16 %v535
    %v604 = vunpack.c.l.b16 %v536
    %v605 = vunpack.c.l.b16 %v537
    %v606 = vunpack.c.l.b16 %v538
    %v607 = vunpack.c.l.b16 %v539
    %v608 = vunpack.c.l.b16 %v540
    %v609 = vunpack.c.l.b16 %v541
    %v610 = vunpack.c.l.b16 %v542
    %v611 = vunpack.c.l.b16 %v543
    %v612 = vunpack.c.l.b16 %v544
    %v613 = vunpack.c.l.b16 %v545
    %v614 = vunpack.c.l.b16 %v546
    %v615 = vunpack.c.l.b16 %v547
    %v616 = vunpack.c.l.b16 %v548
    %v617 = vpack.c.b16 %v586, %v585
    %v618 = vpack.c.b16 %v588, %v587
    %v619 = vpack.c.b16 %v590, %v589
    %v620 = vpack.c.b16 %v592, %v591
    %v621 = vpack.c.b16 %v594, %v593
    %v622 = vpack.c.b16 %v596, %v595
    %v623 = vpack.c.b16 %v598, %v597
    %v624 = vpack.c.b16 %v600, %v599
    %v625 = vpack.c.b16 %v602, %v601
    %v626 = vpack.c.b16 %v604, %v603
    %v627 = vpack.c.b16 %v606, %v605
    %v628 = vpack.c.b16 %v608, %v607
    %v629 = vpack.c.b16 %v610, %v609
    %v630 = vpack.c.b16 %v612, %v611
    %v631 = vpack.c.b16 %v614, %v613
    %v632 = vpack.c.b16 %v616, %v615
    %649 = vmatpush.bf16.msra.mxu0 %v624
    %650 = vmatpush.bf16.msra.mxu0 %v623
    %651 = vmatpush.bf16.msra.mxu0 %v622
    %652 = vmatpush.bf16.msra.mxu0 %v621
    %653 = vmatpush.bf16.msra.mxu0 %v620
    %654 = vmatpush.bf16.msra.mxu0 %v619
    %655 = vmatpush.bf16.msra.mxu0 %v618
    %656 = vmatpush.bf16.msra.mxu0 %v617
    %657 = vmatmul.bf16.gmra.mxu0 %v515
    %v658 = vpop.f32.mrf.mxu0
    %v659 = vadd.f32 %v551, %v658
    %v660 = vpop.f32.mrf.mxu0
    %661 = vdwg.mxu0
    %662 = vmatpush.bf16.msra.mxu0 %v632
    %663 = vmatpush.bf16.msra.mxu0 %v631
    %664 = vmatpush.bf16.msra.mxu0 %v630
    %665 = vmatpush.bf16.msra.mxu0 %v629
    %666 = vmatpush.bf16.msra.mxu0 %v628
    %667 = vmatpush.bf16.msra.mxu0 %v627
    %668 = vmatpush.bf16.msra.mxu0 %v626
    %669 = vmatpush.bf16.msra.mxu0 %v625
    %670 = vmatmul.bf16.gmra.mxu0 %v516
    %v671 = vpop.f32.mrf.mxu0
    %v672 = vadd.f32 %v659, %v671
    %v673 = vpop.f32.mrf.mxu0
    %674 = vdwg.mxu0
    %v675 = vmax.f32 %v672, 0.0
    %v676 = vpack.c.bf16 %v675, %v675
    %v677 = vld [vmem:[#allocation12] sm:$0xf]
    %v678 = vld [vmem:[#allocation12 + $0x4] sm:$0xf]
    %v679 = vld [vmem:[#allocation12 + $0x8] sm:$0xf]
    %v680 = vld [vmem:[#allocation12 + $0xc] sm:$0xf]
    %v681 = vld [vmem:[#allocation12 + $0x10] sm:$0xf]
    %v682 = vld [vmem:[#allocation12 + $0x14] sm:$0xf]
    %v683 = vld [vmem:[#allocation12 + $0x18] sm:$0xf]
    %v684 = vld [vmem:[#allocation12 + $0x1c] sm:$0xf]
    %v685 = vld [vmem:[#allocation12 + $0x20] sm:$0xf]
    %v686 = vld [vmem:[#allocation12 + $0x24] sm:$0xf]
    %v687 = vld [vmem:[#allocation12 + $0x28] sm:$0xf]
    %v688 = vld [vmem:[#allocation12 + $0x2c] sm:$0xf]
    %v689 = vld [vmem:[#allocation12 + $0x30] sm:$0xf]
    %v690 = vld [vmem:[#allocation12 + $0x34] sm:$0xf]
    %v691 = vld [vmem:[#allocation12 + $0x38] sm:$0xf]
    %v692 = vld [vmem:[#allocation12 + $0x3c] sm:$0xf]
    %v693 = vld [vmem:[%s8] sm:$0x1]
    %v695 = vperm.slane %v693, 0
    %v713 = vunpack.c.l.b16 %v677
    %v714 = vunpack.c.l.b16 %v678
    %v715 = vunpack.c.l.b16 %v679
    %v716 = vunpack.c.l.b16 %v680
    %v717 = vunpack.c.l.b16 %v681
    %v718 = vunpack.c.l.b16 %v682
    %v719 = vunpack.c.l.b16 %v683
    %v720 = vunpack.c.l.b16 %v684
    %v721 = vunpack.c.l.b16 %v685
    %v722 = vunpack.c.l.b16 %v686
    %v723 = vunpack.c.l.b16 %v687
    %v724 = vunpack.c.l.b16 %v688
    %v725 = vunpack.c.l.b16 %v689
    %v726 = vunpack.c.l.b16 %v690
    %v727 = vunpack.c.l.b16 %v691
    %v728 = vunpack.c.l.b16 %v692
    %v729 = vpack.c.b16 %v714, %v713
    %v730 = vpack.c.b16 %v716, %v715
    %v731 = vpack.c.b16 %v718, %v717
    %v732 = vpack.c.b16 %v720, %v719
    %v733 = vpack.c.b16 %v722, %v721
    %v734 = vpack.c.b16 %v724, %v723
    %v735 = vpack.c.b16 %v726, %v725
    %v736 = vpack.c.b16 %v728, %v727
    %745 = vmatpush.bf16.msra.mxu0 %v736
    %746 = vmatpush.bf16.msra.mxu0 %v735
    %747 = vmatpush.bf16.msra.mxu0 %v734
    %748 = vmatpush.bf16.msra.mxu0 %v733
    %749 = vmatpush.bf16.msra.mxu0 %v732
    %750 = vmatpush.bf16.msra.mxu0 %v731
    %751 = vmatpush.bf16.msra.mxu0 %v730
    %752 = vmatpush.bf16.msra.mxu0 %v729
    %753 = vmatmul.bf16.gmra.mxu0 %v676
    %v754 = vpop.f32.mrf.mxu0
    %v755 = vadd.f32 %v695, %v754
    %v756 = vpop.f32.mrf.mxu0
    %757 = vdwg.mxu0
    %vm758 = vcmask 17408
    %759 = vst.msk [vmem:[#allocation14] sm:$0x3] %vm758, %v755
    // Predicated region
    $region62: #{tpu_custom_call.1} parent=1 // pred_check
      _
    $region63: #{tpu_custom_call.1} parent=1 // pred_check_branch
      %761 = sbr.rel (0) target = $region65
    $region64: #{tpu_custom_call.1} parent=1 // pred_region
      %763 = vsyncadd [#allocation5], 0
      %s765 = sshll.u32 [#allocation14], 4
      %s766 = int_to_ptr.vmem [resolvable:$true] %s765
      %s767 = sshll.u32 %s9, 4
      %s768 = int_to_ptr.hbm [resolvable:$true] %s767
      %770 = dma.vmem_to_hbm [thread:$0]  %s766, 32, %s768, [#allocation5]
    $region65: #{tpu_custom_call.1} parent=1 // pred_fallthru
      _
    // Predicated region
    $region66: #{tpu_custom_call.1} parent=1 // pred_check
      _
    $region67: #{tpu_custom_call.1} parent=1 // pred_check_branch
      %772 = sbr.rel (0) target = $region69
    $region68: #{tpu_custom_call.1} parent=1 // pred_region
      %774 = dma.done [#allocation5], 32
    $region69: #{tpu_custom_call.1} parent=1 // pred_fallthru
      _
    %775 = vsyncpa [#allocation4], 1
    %776 = vsyncpa [#allocation7], 1
    %777 = vsyncpa [#allocation10], 1
    %778 = vsyncpa [#allocation13], 1
    %779 = vsyncpa [#allocation5], 1

</llo_original>
